<compile_context>
chip_gen: v5e
topology: v5e:2x2
jax: 0.10.0
libtpu: 0.0.40
codegen_flags: <defaults>
</compile_context>

<pallas_src>
import jax
import jax.numpy as jnp
from jax.experimental import pallas as pl
from jax.experimental.pallas import tpu as pltpu  # noqa: F401  (TPU backend)


def _encoder_kernel(x_ref, wx_ref, wh_ref, b_ref, h_ref, c_ref):
    S, B, _ = x_ref.shape
    H = h_ref.shape[-1]

    # ---- Phase 1: hoisted input projection (one big MXU contraction) -------
    # (S, B, I) . (I, 4H) -> (S, B, 4H); combined bias folded in once.
    xproj = jax.lax.dot_general(
        x_ref[...], wx_ref[...],
        dimension_numbers=(((2,), (0,)), ((), ())),
        preferred_element_type=jnp.float32,
    ) + b_ref[...]

    wh = wh_ref[...]  # (H, 4H) fused recurrent weights [i | f | o | g]

    h = jnp.zeros((B, H), jnp.float32)
    c = jnp.zeros((B, H), jnp.float32)

    # ---- Phase 2: sequential recurrence (fully unrolled, static indices) ---
    for t in range(S):
        # One fused (B, H) x (H, 4H) matmul per step; 4H = 128 lane-dense.
        # xproj[t] is a leading-axis index -> contiguous (B, 4H) tile.
        pre = xproj[t] + jnp.dot(h, wh, preferred_element_type=jnp.float32)
        i_t = jax.nn.sigmoid(pre[:, 0 * H:1 * H])
        f_t = jax.nn.sigmoid(pre[:, 1 * H:2 * H])
        o_t = jax.nn.sigmoid(pre[:, 2 * H:3 * H])
        g_t = jnp.tanh(pre[:, 3 * H:4 * H])
        c = f_t * c + i_t * g_t
        h = o_t * jnp.tanh(c)

    h_ref[...] = h
    c_ref[...] = c


def encoder_forward(x, wx4, wh4, b4):
    """x: (B, S, I); wx4: (I, 4H); wh4: (H, 4H); b4: (1, 4H).

    Returns (h_T, c_T), each (B, H), matching Encoder.forward.
    """
    B, S, I = x.shape
    H = wh4.shape[0]
    # Time-major layout so the kernel's per-step access is a leading index
    # (layout plumbing only; no compute hoisted into the wrapper).
    x_tm = jnp.transpose(x, (1, 0, 2))  # (S, B, I)
    h, c = pl.pallas_call(
        _encoder_kernel,
        out_shape=(jax.ShapeDtypeStruct((B, H), jnp.float32),
                   jax.ShapeDtypeStruct((B, H), jnp.float32)),
    )(x_tm, wx4, wh4, b4)
    return h, c


if __name__ == "__main__":
    # Small shapes consistent with the module: batch=2, seq=8, input=16, hidden=32
    B, S, I, H = 2, 8, 16, 32
    key = jax.random.PRNGKey(0)
    keys = jax.random.split(key, 17)

    x = jax.random.normal(keys[0], (B, S, I), jnp.float32)

    # PyTorch-style Linear params per gate (gate order [i, f, o, g]):
    #   W_x*: (H, I) with bias (H,),  W_h*: (H, H) with bias (H,)
    Wx = [0.1 * jax.random.normal(keys[1 + g], (H, I), jnp.float32) for g in range(4)]
    bx = [0.1 * jax.random.normal(keys[5 + g], (H,), jnp.float32) for g in range(4)]
    Wh = [0.1 * jax.random.normal(keys[9 + g], (H, H), jnp.float32) for g in range(4)]
    bh = [0.1 * jax.random.normal(keys[13 + g], (H,), jnp.float32) for g in range(4)]

    # Fused, transposed packing for the kernel: (I, 4H), (H, 4H), combined bias (1, 4H).
    wx4 = jnp.concatenate([w.T for w in Wx], axis=1)
    wh4 = jnp.concatenate([w.T for w in Wh], axis=1)
    b4 = (jnp.concatenate(bx) + jnp.concatenate(bh)).reshape(1, 4 * H)

    h_out, c_out = encoder_forward(x, wx4, wh4, b4)
    jax.block_until_ready((h_out, c_out))

    # Pure-JAX reference mirroring the PyTorch loop with per-gate Linears.
    def reference(x):
        h = jnp.zeros((B, H), jnp.float32)
        c = jnp.zeros((B, H), jnp.float32)
        for t in range(S):
            x_t = x[:, t, :]
            i_t = jax.nn.sigmoid(x_t @ Wx[0].T + bx[0] + h @ Wh[0].T + bh[0])
            f_t = jax.nn.sigmoid(x_t @ Wx[1].T + bx[1] + h @ Wh[1].T + bh[1])
            o_t = jax.nn.sigmoid(x_t @ Wx[2].T + bx[2] + h @ Wh[2].T + bh[2])
            g_t = jnp.tanh(x_t @ Wx[3].T + bx[3] + h @ Wh[3].T + bh[3])
            c = f_t * c + i_t * g_t
            h = o_t * jnp.tanh(c)
        return h, c

    h_ref, c_ref = reference(x)
    assert jnp.allclose(h_out, h_ref, atol=2e-5, rtol=2e-5), "h mismatch"
    assert jnp.allclose(c_out, c_ref, atol=2e-5, rtol=2e-5), "c mismatch"

    print("KERNEL_OK")
</pallas_src>

<mosaic_0001>
module attributes {stable_mosaic.version = 11 : i64} {
  func.func @_encoder_kernel(%arg0: memref<8x2x16xf32, #tpu.memory_space<vmem>>, %arg1: memref<16x128xf32, #tpu.memory_space<vmem>>, %arg2: memref<32x128xf32, #tpu.memory_space<vmem>>, %arg3: memref<1x128xf32, #tpu.memory_space<vmem>>, %arg4: memref<2x32xf32, #tpu.memory_space<vmem>>, %arg5: memref<2x32xf32, #tpu.memory_space<vmem>>) attributes {dimension_semantics = [], scalar_prefetch = 0 : i64, scratch_operands = 0 : i64, tpu.core_type = #tpu.core_type<tc>} {
    %c0 = arith.constant 0 : index
    %c0_0 = arith.constant 0 : index
    %c0_1 = arith.constant 0 : index
    %0 = vector.load %arg0[%c0, %c0_0, %c0_1] : memref<8x2x16xf32, #tpu.memory_space<vmem>>, vector<8x2x16xf32>
    %c0_2 = arith.constant 0 : index
    %c0_3 = arith.constant 0 : index
    %1 = vector.load %arg1[%c0_2, %c0_3] : memref<16x128xf32, #tpu.memory_space<vmem>>, vector<16x128xf32>
    %cst = arith.constant dense<0.000000e+00> : vector<8x2x128xf32>
    %2 = tpu.matmul %0, %1, %cst {dimension_numbers = #tpu.dot_dimension_numbers<[2], [0], [0, 1], [1], [0, 0, 0, 1, 1, 1], [], []>} : vector<8x2x16xf32>, vector<16x128xf32>, vector<8x2x128xf32> -> vector<8x2x128xf32>
    %c0_4 = arith.constant 0 : index
    %c0_5 = arith.constant 0 : index
    %3 = vector.load %arg3[%c0_4, %c0_5] : memref<1x128xf32, #tpu.memory_space<vmem>>, vector<1x128xf32>
    %4 = vector.shape_cast %3 : vector<1x128xf32> to vector<1x1x128xf32>
    %5 = vector.broadcast %4 : vector<1x1x128xf32> to vector<8x2x128xf32>
    %6 = arith.addf %2, %5 : vector<8x2x128xf32>
    %c0_6 = arith.constant 0 : index
    %c0_7 = arith.constant 0 : index
    %7 = vector.load %arg2[%c0_6, %c0_7] : memref<32x128xf32, #tpu.memory_space<vmem>>, vector<32x128xf32>
    %cst_8 = arith.constant 0.000000e+00 : f32
    %8 = vector.broadcast %cst_8 : f32 to vector<2x32xf32>
    %cst_9 = arith.constant 0.000000e+00 : f32
    %9 = vector.broadcast %cst_9 : f32 to vector<2x32xf32>
    %10 = vector.extract_strided_slice %6 {offsets = [0, 0, 0], sizes = [1, 2, 128], strides = [1, 1, 1]} : vector<8x2x128xf32> to vector<1x2x128xf32>
    %11 = vector.shape_cast %10 : vector<1x2x128xf32> to vector<2x128xf32>
    %cst_10 = arith.constant dense<0.000000e+00> : vector<2x128xf32>
    %12 = tpu.matmul %8, %7, %cst_10 {dimension_numbers = #tpu.dot_dimension_numbers<[1], [0], [0], [1], [0, 0, 1, 1], [], []>} : vector<2x32xf32>, vector<32x128xf32>, vector<2x128xf32> -> vector<2x128xf32>
    %13 = arith.addf %11, %12 : vector<2x128xf32>
    %14 = vector.extract_strided_slice %13 {offsets = [0, 0], sizes = [2, 32], strides = [1, 1]} : vector<2x128xf32> to vector<2x32xf32>
    %15 = arith.negf %14 : vector<2x32xf32>
    %16 = math.exp %15 : vector<2x32xf32>
    %cst_11 = arith.constant 1.000000e+00 : f32
    %17 = vector.broadcast %cst_11 : f32 to vector<2x32xf32>
    %18 = arith.addf %17, %16 : vector<2x32xf32>
    %19 = arith.divf %17, %18 : vector<2x32xf32>
    %20 = vector.extract_strided_slice %13 {offsets = [0, 32], sizes = [2, 32], strides = [1, 1]} : vector<2x128xf32> to vector<2x32xf32>
    %21 = arith.negf %20 : vector<2x32xf32>
    %22 = math.exp %21 : vector<2x32xf32>
    %cst_12 = arith.constant 1.000000e+00 : f32
    %23 = vector.broadcast %cst_12 : f32 to vector<2x32xf32>
    %24 = arith.addf %23, %22 : vector<2x32xf32>
    %25 = arith.divf %23, %24 : vector<2x32xf32>
    %26 = vector.extract_strided_slice %13 {offsets = [0, 64], sizes = [2, 32], strides = [1, 1]} : vector<2x128xf32> to vector<2x32xf32>
    %27 = arith.negf %26 : vector<2x32xf32>
    %28 = math.exp %27 : vector<2x32xf32>
    %cst_13 = arith.constant 1.000000e+00 : f32
    %29 = vector.broadcast %cst_13 : f32 to vector<2x32xf32>
    %30 = arith.addf %29, %28 : vector<2x32xf32>
    %31 = arith.divf %29, %30 : vector<2x32xf32>
    %32 = vector.extract_strided_slice %13 {offsets = [0, 96], sizes = [2, 32], strides = [1, 1]} : vector<2x128xf32> to vector<2x32xf32>
    %33 = math.tanh %32 : vector<2x32xf32>
    %34 = arith.mulf %25, %9 : vector<2x32xf32>
    %35 = arith.mulf %19, %33 : vector<2x32xf32>
    %36 = arith.addf %34, %35 : vector<2x32xf32>
    %37 = math.tanh %36 : vector<2x32xf32>
    %38 = arith.mulf %31, %37 : vector<2x32xf32>
    %39 = vector.extract_strided_slice %6 {offsets = [1, 0, 0], sizes = [1, 2, 128], strides = [1, 1, 1]} : vector<8x2x128xf32> to vector<1x2x128xf32>
    %40 = vector.shape_cast %39 : vector<1x2x128xf32> to vector<2x128xf32>
    %cst_14 = arith.constant dense<0.000000e+00> : vector<2x128xf32>
    %41 = tpu.matmul %38, %7, %cst_14 {dimension_numbers = #tpu.dot_dimension_numbers<[1], [0], [0], [1], [0, 0, 1, 1], [], []>} : vector<2x32xf32>, vector<32x128xf32>, vector<2x128xf32> -> vector<2x128xf32>
    %42 = arith.addf %40, %41 : vector<2x128xf32>
    %43 = vector.extract_strided_slice %42 {offsets = [0, 0], sizes = [2, 32], strides = [1, 1]} : vector<2x128xf32> to vector<2x32xf32>
    %44 = arith.negf %43 : vector<2x32xf32>
    %45 = math.exp %44 : vector<2x32xf32>
    %cst_15 = arith.constant 1.000000e+00 : f32
    %46 = vector.broadcast %cst_15 : f32 to vector<2x32xf32>
    %47 = arith.addf %46, %45 : vector<2x32xf32>
    %48 = arith.divf %46, %47 : vector<2x32xf32>
    %49 = vector.extract_strided_slice %42 {offsets = [0, 32], sizes = [2, 32], strides = [1, 1]} : vector<2x128xf32> to vector<2x32xf32>
    %50 = arith.negf %49 : vector<2x32xf32>
    %51 = math.exp %50 : vector<2x32xf32>
    %cst_16 = arith.constant 1.000000e+00 : f32
    %52 = vector.broadcast %cst_16 : f32 to vector<2x32xf32>
    %53 = arith.addf %52, %51 : vector<2x32xf32>
    %54 = arith.divf %52, %53 : vector<2x32xf32>
    %55 = vector.extract_strided_slice %42 {offsets = [0, 64], sizes = [2, 32], strides = [1, 1]} : vector<2x128xf32> to vector<2x32xf32>
    %56 = arith.negf %55 : vector<2x32xf32>
    %57 = math.exp %56 : vector<2x32xf32>
    %cst_17 = arith.constant 1.000000e+00 : f32
    %58 = vector.broadcast %cst_17 : f32 to vector<2x32xf32>
    %59 = arith.addf %58, %57 : vector<2x32xf32>
    %60 = arith.divf %58, %59 : vector<2x32xf32>
    %61 = vector.extract_strided_slice %42 {offsets = [0, 96], sizes = [2, 32], strides = [1, 1]} : vector<2x128xf32> to vector<2x32xf32>
    %62 = math.tanh %61 : vector<2x32xf32>
    %63 = arith.mulf %54, %36 : vector<2x32xf32>
    %64 = arith.mulf %48, %62 : vector<2x32xf32>
    %65 = arith.addf %63, %64 : vector<2x32xf32>
    %66 = math.tanh %65 : vector<2x32xf32>
    %67 = arith.mulf %60, %66 : vector<2x32xf32>
    %68 = vector.extract_strided_slice %6 {offsets = [2, 0, 0], sizes = [1, 2, 128], strides = [1, 1, 1]} : vector<8x2x128xf32> to vector<1x2x128xf32>
    %69 = vector.shape_cast %68 : vector<1x2x128xf32> to vector<2x128xf32>
    %cst_18 = arith.constant dense<0.000000e+00> : vector<2x128xf32>
    %70 = tpu.matmul %67, %7, %cst_18 {dimension_numbers = #tpu.dot_dimension_numbers<[1], [0], [0], [1], [0, 0, 1, 1], [], []>} : vector<2x32xf32>, vector<32x128xf32>, vector<2x128xf32> -> vector<2x128xf32>
    %71 = arith.addf %69, %70 : vector<2x128xf32>
    %72 = vector.extract_strided_slice %71 {offsets = [0, 0], sizes = [2, 32], strides = [1, 1]} : vector<2x128xf32> to vector<2x32xf32>
    %73 = arith.negf %72 : vector<2x32xf32>
    %74 = math.exp %73 : vector<2x32xf32>
    %cst_19 = arith.constant 1.000000e+00 : f32
    %75 = vector.broadcast %cst_19 : f32 to vector<2x32xf32>
    %76 = arith.addf %75, %74 : vector<2x32xf32>
    %77 = arith.divf %75, %76 : vector<2x32xf32>
    %78 = vector.extract_strided_slice %71 {offsets = [0, 32], sizes = [2, 32], strides = [1, 1]} : vector<2x128xf32> to vector<2x32xf32>
    %79 = arith.negf %78 : vector<2x32xf32>
    %80 = math.exp %79 : vector<2x32xf32>
    %cst_20 = arith.constant 1.000000e+00 : f32
    %81 = vector.broadcast %cst_20 : f32 to vector<2x32xf32>
    %82 = arith.addf %81, %80 : vector<2x32xf32>
    %83 = arith.divf %81, %82 : vector<2x32xf32>
    %84 = vector.extract_strided_slice %71 {offsets = [0, 64], sizes = [2, 32], strides = [1, 1]} : vector<2x128xf32> to vector<2x32xf32>
    %85 = arith.negf %84 : vector<2x32xf32>
    %86 = math.exp %85 : vector<2x32xf32>
    %cst_21 = arith.constant 1.000000e+00 : f32
    %87 = vector.broadcast %cst_21 : f32 to vector<2x32xf32>
    %88 = arith.addf %87, %86 : vector<2x32xf32>
    %89 = arith.divf %87, %88 : vector<2x32xf32>
    %90 = vector.extract_strided_slice %71 {offsets = [0, 96], sizes = [2, 32], strides = [1, 1]} : vector<2x128xf32> to vector<2x32xf32>
    %91 = math.tanh %90 : vector<2x32xf32>
    %92 = arith.mulf %83, %65 : vector<2x32xf32>
    %93 = arith.mulf %77, %91 : vector<2x32xf32>
    %94 = arith.addf %92, %93 : vector<2x32xf32>
    %95 = math.tanh %94 : vector<2x32xf32>
    %96 = arith.mulf %89, %95 : vector<2x32xf32>
    %97 = vector.extract_strided_slice %6 {offsets = [3, 0, 0], sizes = [1, 2, 128], strides = [1, 1, 1]} : vector<8x2x128xf32> to vector<1x2x128xf32>
    %98 = vector.shape_cast %97 : vector<1x2x128xf32> to vector<2x128xf32>
    %cst_22 = arith.constant dense<0.000000e+00> : vector<2x128xf32>
    %99 = tpu.matmul %96, %7, %cst_22 {dimension_numbers = #tpu.dot_dimension_numbers<[1], [0], [0], [1], [0, 0, 1, 1], [], []>} : vector<2x32xf32>, vector<32x128xf32>, vector<2x128xf32> -> vector<2x128xf32>
    %100 = arith.addf %98, %99 : vector<2x128xf32>
    %101 = vector.extract_strided_slice %100 {offsets = [0, 0], sizes = [2, 32], strides = [1, 1]} : vector<2x128xf32> to vector<2x32xf32>
    %102 = arith.negf %101 : vector<2x32xf32>
    %103 = math.exp %102 : vector<2x32xf32>
    %cst_23 = arith.constant 1.000000e+00 : f32
    %104 = vector.broadcast %cst_23 : f32 to vector<2x32xf32>
    %105 = arith.addf %104, %103 : vector<2x32xf32>
    %106 = arith.divf %104, %105 : vector<2x32xf32>
    %107 = vector.extract_strided_slice %100 {offsets = [0, 32], sizes = [2, 32], strides = [1, 1]} : vector<2x128xf32> to vector<2x32xf32>
    %108 = arith.negf %107 : vector<2x32xf32>
    %109 = math.exp %108 : vector<2x32xf32>
    %cst_24 = arith.constant 1.000000e+00 : f32
    %110 = vector.broadcast %cst_24 : f32 to vector<2x32xf32>
    %111 = arith.addf %110, %109 : vector<2x32xf32>
    %112 = arith.divf %110, %111 : vector<2x32xf32>
    %113 = vector.extract_strided_slice %100 {offsets = [0, 64], sizes = [2, 32], strides = [1, 1]} : vector<2x128xf32> to vector<2x32xf32>
    %114 = arith.negf %113 : vector<2x32xf32>
    %115 = math.exp %114 : vector<2x32xf32>
    %cst_25 = arith.constant 1.000000e+00 : f32
    %116 = vector.broadcast %cst_25 : f32 to vector<2x32xf32>
    %117 = arith.addf %116, %115 : vector<2x32xf32>
    %118 = arith.divf %116, %117 : vector<2x32xf32>
    %119 = vector.extract_strided_slice %100 {offsets = [0, 96], sizes = [2, 32], strides = [1, 1]} : vector<2x128xf32> to vector<2x32xf32>
    %120 = math.tanh %119 : vector<2x32xf32>
    %121 = arith.mulf %112, %94 : vector<2x32xf32>
    %122 = arith.mulf %106, %120 : vector<2x32xf32>
    %123 = arith.addf %121, %122 : vector<2x32xf32>
    %124 = math.tanh %123 : vector<2x32xf32>
    %125 = arith.mulf %118, %124 : vector<2x32xf32>
    %126 = vector.extract_strided_slice %6 {offsets = [4, 0, 0], sizes = [1, 2, 128], strides = [1, 1, 1]} : vector<8x2x128xf32> to vector<1x2x128xf32>
    %127 = vector.shape_cast %126 : vector<1x2x128xf32> to vector<2x128xf32>
    %cst_26 = arith.constant dense<0.000000e+00> : vector<2x128xf32>
    %128 = tpu.matmul %125, %7, %cst_26 {dimension_numbers = #tpu.dot_dimension_numbers<[1], [0], [0], [1], [0, 0, 1, 1], [], []>} : vector<2x32xf32>, vector<32x128xf32>, vector<2x128xf32> -> vector<2x128xf32>
    %129 = arith.addf %127, %128 : vector<2x128xf32>
    %130 = vector.extract_strided_slice %129 {offsets = [0, 0], sizes = [2, 32], strides = [1, 1]} : vector<2x128xf32> to vector<2x32xf32>
    %131 = arith.negf %130 : vector<2x32xf32>
    %132 = math.exp %131 : vector<2x32xf32>
    %cst_27 = arith.constant 1.000000e+00 : f32
    %133 = vector.broadcast %cst_27 : f32 to vector<2x32xf32>
    %134 = arith.addf %133, %132 : vector<2x32xf32>
    %135 = arith.divf %133, %134 : vector<2x32xf32>
    %136 = vector.extract_strided_slice %129 {offsets = [0, 32], sizes = [2, 32], strides = [1, 1]} : vector<2x128xf32> to vector<2x32xf32>
    %137 = arith.negf %136 : vector<2x32xf32>
    %138 = math.exp %137 : vector<2x32xf32>
    %cst_28 = arith.constant 1.000000e+00 : f32
    %139 = vector.broadcast %cst_28 : f32 to vector<2x32xf32>
    %140 = arith.addf %139, %138 : vector<2x32xf32>
    %141 = arith.divf %139, %140 : vector<2x32xf32>
    %142 = vector.extract_strided_slice %129 {offsets = [0, 64], sizes = [2, 32], strides = [1, 1]} : vector<2x128xf32> to vector<2x32xf32>
    %143 = arith.negf %142 : vector<2x32xf32>
    %144 = math.exp %143 : vector<2x32xf32>
    %cst_29 = arith.constant 1.000000e+00 : f32
    %145 = vector.broadcast %cst_29 : f32 to vector<2x32xf32>
    %146 = arith.addf %145, %144 : vector<2x32xf32>
    %147 = arith.divf %145, %146 : vector<2x32xf32>
    %148 = vector.extract_strided_slice %129 {offsets = [0, 96], sizes = [2, 32], strides = [1, 1]} : vector<2x128xf32> to vector<2x32xf32>
    %149 = math.tanh %148 : vector<2x32xf32>
    %150 = arith.mulf %141, %123 : vector<2x32xf32>
    %151 = arith.mulf %135, %149 : vector<2x32xf32>
    %152 = arith.addf %150, %151 : vector<2x32xf32>
    %153 = math.tanh %152 : vector<2x32xf32>
    %154 = arith.mulf %147, %153 : vector<2x32xf32>
    %155 = vector.extract_strided_slice %6 {offsets = [5, 0, 0], sizes = [1, 2, 128], strides = [1, 1, 1]} : vector<8x2x128xf32> to vector<1x2x128xf32>
    %156 = vector.shape_cast %155 : vector<1x2x128xf32> to vector<2x128xf32>
    %cst_30 = arith.constant dense<0.000000e+00> : vector<2x128xf32>
    %157 = tpu.matmul %154, %7, %cst_30 {dimension_numbers = #tpu.dot_dimension_numbers<[1], [0], [0], [1], [0, 0, 1, 1], [], []>} : vector<2x32xf32>, vector<32x128xf32>, vector<2x128xf32> -> vector<2x128xf32>
    %158 = arith.addf %156, %157 : vector<2x128xf32>
    %159 = vector.extract_strided_slice %158 {offsets = [0, 0], sizes = [2, 32], strides = [1, 1]} : vector<2x128xf32> to vector<2x32xf32>
    %160 = arith.negf %159 : vector<2x32xf32>
    %161 = math.exp %160 : vector<2x32xf32>
    %cst_31 = arith.constant 1.000000e+00 : f32
    %162 = vector.broadcast %cst_31 : f32 to vector<2x32xf32>
    %163 = arith.addf %162, %161 : vector<2x32xf32>
    %164 = arith.divf %162, %163 : vector<2x32xf32>
    %165 = vector.extract_strided_slice %158 {offsets = [0, 32], sizes = [2, 32], strides = [1, 1]} : vector<2x128xf32> to vector<2x32xf32>
    %166 = arith.negf %165 : vector<2x32xf32>
    %167 = math.exp %166 : vector<2x32xf32>
    %cst_32 = arith.constant 1.000000e+00 : f32
    %168 = vector.broadcast %cst_32 : f32 to vector<2x32xf32>
    %169 = arith.addf %168, %167 : vector<2x32xf32>
    %170 = arith.divf %168, %169 : vector<2x32xf32>
    %171 = vector.extract_strided_slice %158 {offsets = [0, 64], sizes = [2, 32], strides = [1, 1]} : vector<2x128xf32> to vector<2x32xf32>
    %172 = arith.negf %171 : vector<2x32xf32>
    %173 = math.exp %172 : vector<2x32xf32>
    %cst_33 = arith.constant 1.000000e+00 : f32
    %174 = vector.broadcast %cst_33 : f32 to vector<2x32xf32>
    %175 = arith.addf %174, %173 : vector<2x32xf32>
    %176 = arith.divf %174, %175 : vector<2x32xf32>
    %177 = vector.extract_strided_slice %158 {offsets = [0, 96], sizes = [2, 32], strides = [1, 1]} : vector<2x128xf32> to vector<2x32xf32>
    %178 = math.tanh %177 : vector<2x32xf32>
    %179 = arith.mulf %170, %152 : vector<2x32xf32>
    %180 = arith.mulf %164, %178 : vector<2x32xf32>
    %181 = arith.addf %179, %180 : vector<2x32xf32>
    %182 = math.tanh %181 : vector<2x32xf32>
    %183 = arith.mulf %176, %182 : vector<2x32xf32>
    %184 = vector.extract_strided_slice %6 {offsets = [6, 0, 0], sizes = [1, 2, 128], strides = [1, 1, 1]} : vector<8x2x128xf32> to vector<1x2x128xf32>
    %185 = vector.shape_cast %184 : vector<1x2x128xf32> to vector<2x128xf32>
    %cst_34 = arith.constant dense<0.000000e+00> : vector<2x128xf32>
    %186 = tpu.matmul %183, %7, %cst_34 {dimension_numbers = #tpu.dot_dimension_numbers<[1], [0], [0], [1], [0, 0, 1, 1], [], []>} : vector<2x32xf32>, vector<32x128xf32>, vector<2x128xf32> -> vector<2x128xf32>
    %187 = arith.addf %185, %186 : vector<2x128xf32>
    %188 = vector.extract_strided_slice %187 {offsets = [0, 0], sizes = [2, 32], strides = [1, 1]} : vector<2x128xf32> to vector<2x32xf32>
    %189 = arith.negf %188 : vector<2x32xf32>
    %190 = math.exp %189 : vector<2x32xf32>
    %cst_35 = arith.constant 1.000000e+00 : f32
    %191 = vector.broadcast %cst_35 : f32 to vector<2x32xf32>
    %192 = arith.addf %191, %190 : vector<2x32xf32>
    %193 = arith.divf %191, %192 : vector<2x32xf32>
    %194 = vector.extract_strided_slice %187 {offsets = [0, 32], sizes = [2, 32], strides = [1, 1]} : vector<2x128xf32> to vector<2x32xf32>
    %195 = arith.negf %194 : vector<2x32xf32>
    %196 = math.exp %195 : vector<2x32xf32>
    %cst_36 = arith.constant 1.000000e+00 : f32
    %197 = vector.broadcast %cst_36 : f32 to vector<2x32xf32>
    %198 = arith.addf %197, %196 : vector<2x32xf32>
    %199 = arith.divf %197, %198 : vector<2x32xf32>
    %200 = vector.extract_strided_slice %187 {offsets = [0, 64], sizes = [2, 32], strides = [1, 1]} : vector<2x128xf32> to vector<2x32xf32>
    %201 = arith.negf %200 : vector<2x32xf32>
    %202 = math.exp %201 : vector<2x32xf32>
    %cst_37 = arith.constant 1.000000e+00 : f32
    %203 = vector.broadcast %cst_37 : f32 to vector<2x32xf32>
    %204 = arith.addf %203, %202 : vector<2x32xf32>
    %205 = arith.divf %203, %204 : vector<2x32xf32>
    %206 = vector.extract_strided_slice %187 {offsets = [0, 96], sizes = [2, 32], strides = [1, 1]} : vector<2x128xf32> to vector<2x32xf32>
    %207 = math.tanh %206 : vector<2x32xf32>
    %208 = arith.mulf %199, %181 : vector<2x32xf32>
    %209 = arith.mulf %193, %207 : vector<2x32xf32>
    %210 = arith.addf %208, %209 : vector<2x32xf32>
    %211 = math.tanh %210 : vector<2x32xf32>
    %212 = arith.mulf %205, %211 : vector<2x32xf32>
    %213 = vector.extract_strided_slice %6 {offsets = [7, 0, 0], sizes = [1, 2, 128], strides = [1, 1, 1]} : vector<8x2x128xf32> to vector<1x2x128xf32>
    %214 = vector.shape_cast %213 : vector<1x2x128xf32> to vector<2x128xf32>
    %cst_38 = arith.constant dense<0.000000e+00> : vector<2x128xf32>
    %215 = tpu.matmul %212, %7, %cst_38 {dimension_numbers = #tpu.dot_dimension_numbers<[1], [0], [0], [1], [0, 0, 1, 1], [], []>} : vector<2x32xf32>, vector<32x128xf32>, vector<2x128xf32> -> vector<2x128xf32>
    %216 = arith.addf %214, %215 : vector<2x128xf32>
    %217 = vector.extract_strided_slice %216 {offsets = [0, 0], sizes = [2, 32], strides = [1, 1]} : vector<2x128xf32> to vector<2x32xf32>
    %218 = arith.negf %217 : vector<2x32xf32>
    %219 = math.exp %218 : vector<2x32xf32>
    %cst_39 = arith.constant 1.000000e+00 : f32
    %220 = vector.broadcast %cst_39 : f32 to vector<2x32xf32>
    %221 = arith.addf %220, %219 : vector<2x32xf32>
    %222 = arith.divf %220, %221 : vector<2x32xf32>
    %223 = vector.extract_strided_slice %216 {offsets = [0, 32], sizes = [2, 32], strides = [1, 1]} : vector<2x128xf32> to vector<2x32xf32>
    %224 = arith.negf %223 : vector<2x32xf32>
    %225 = math.exp %224 : vector<2x32xf32>
    %cst_40 = arith.constant 1.000000e+00 : f32
    %226 = vector.broadcast %cst_40 : f32 to vector<2x32xf32>
    %227 = arith.addf %226, %225 : vector<2x32xf32>
    %228 = arith.divf %226, %227 : vector<2x32xf32>
    %229 = vector.extract_strided_slice %216 {offsets = [0, 64], sizes = [2, 32], strides = [1, 1]} : vector<2x128xf32> to vector<2x32xf32>
    %230 = arith.negf %229 : vector<2x32xf32>
    %231 = math.exp %230 : vector<2x32xf32>
    %cst_41 = arith.constant 1.000000e+00 : f32
    %232 = vector.broadcast %cst_41 : f32 to vector<2x32xf32>
    %233 = arith.addf %232, %231 : vector<2x32xf32>
    %234 = arith.divf %232, %233 : vector<2x32xf32>
    %235 = vector.extract_strided_slice %216 {offsets = [0, 96], sizes = [2, 32], strides = [1, 1]} : vector<2x128xf32> to vector<2x32xf32>
    %236 = math.tanh %235 : vector<2x32xf32>
    %237 = arith.mulf %228, %210 : vector<2x32xf32>
    %238 = arith.mulf %222, %236 : vector<2x32xf32>
    %239 = arith.addf %237, %238 : vector<2x32xf32>
    %240 = math.tanh %239 : vector<2x32xf32>
    %241 = arith.mulf %234, %240 : vector<2x32xf32>
    %c0_42 = arith.constant 0 : index
    %c0_43 = arith.constant 0 : index
    %242 = vector.load %arg4[%c0_42, %c0_43] : memref<2x32xf32, #tpu.memory_space<vmem>>, vector<2x32xf32>
    tpu.vector_store %arg4[%c0_42, %c0_43], %241 {strides = array<i32>} : memref<2x32xf32, #tpu.memory_space<vmem>>, vector<2x32xf32>,
    %c0_44 = arith.constant 0 : index
    %c0_45 = arith.constant 0 : index
    %243 = vector.load %arg5[%c0_44, %c0_45] : memref<2x32xf32, #tpu.memory_space<vmem>>, vector<2x32xf32>
    tpu.vector_store %arg5[%c0_44, %c0_45], %239 {strides = array<i32>} : memref<2x32xf32, #tpu.memory_space<vmem>>, vector<2x32xf32>,
    return
  }
}

</mosaic_0001>

<llo_original>
// kernel: tpu_custom_call.1
$region0: #{tpu_custom_call.1}
  #allocation0 [shape = 'u32[]', space=smem, size = 0x4, offset = 0x4, fixed_abs, tag = 'smem constant byte address 0x4 - core index']
  #allocation1 [shape = 'u32[72,128]{1,0:T(1,128)}', space=vmem, size = 0x9000, scoped, tag = 'internal scratch']
  %s0 = inlined_call_operand.hbm [shape: f32[8,2,16], index: 0, kind: input, shape index: {}]
  %s1 = inlined_call_operand.hbm [shape: f32[16,128], index: 1, kind: input, shape index: {}]
  %s2 = inlined_call_operand.hbm [shape: f32[32,128], index: 2, kind: input, shape index: {}]
  %s3 = inlined_call_operand.vmem [shape: f32[1,128], index: 3, kind: input, shape index: {}]
  %s4 = inlined_call_operand.hbm [shape: f32[2,32], index: 4, kind: output, shape index: {0}]
  %s5 = inlined_call_operand.hbm [shape: f32[2,32], index: 5, kind: output, shape index: {1}]
  %6 = xla_tuple %s4, %s5
  %s7 = sld [smem:[#allocation0]]
  $region46: #{tpu_custom_call.1} parent=0
    _
  %s9 = ssub.s32 1, %s7
  %s10 = scalar_select 0, %s9, %s7
  $region1: #{tpu_custom_call.1} parent=0
    #allocation2 [shape = 'u8[8192]{0}', space=vmem, size = 0x2000, scoped, tag = 'input window, operand 0, single buffered']
    #allocation3 [shape = 's32[1]{0}', space=sflag, size = 0x4, scoped, tag = 'scoped memory for tpu_custom_call.1']
    #allocation4 [shape = 's32[1]{0}', space=sflag, size = 0x4, scoped, tag = 'scoped memory for tpu_custom_call.1']
    #allocation5 [shape = 'u8[8192]{0}', space=vmem, size = 0x2000, scoped, tag = 'input window, operand 1, single buffered']
    #allocation6 [shape = 's32[1]{0}', space=sflag, size = 0x4, scoped, tag = 'scoped memory for tpu_custom_call.1']
    #allocation7 [shape = 'u8[16384]{0}', space=vmem, size = 0x4000, scoped, tag = 'input window, operand 2, single buffered']
    #allocation8 [shape = 'u8[1024]{0}', space=vmem, size = 0x400, scoped, tag = 'output window, operand 0, single buffered']
    #allocation9 [shape = 'u8[1024]{0}', space=vmem, size = 0x400, scoped, tag = 'output window, operand 1, single buffered']
    #allocation10 [shape = 's32[1]{0}', space=sflag, size = 0x4, scoped, tag = 'scoped memory for tpu_custom_call.1']
    %11 = vsyncpa [#allocation3], 0
    %12 = vsyncpa [#allocation6], 0
    %13 = vsyncpa [#allocation4], 0
    %14 = vsyncpa [#allocation10], 0
    // Predicated region
    $region2: #{tpu_custom_call.1} parent=1 // pred_check
      _
    $region3: #{tpu_custom_call.1} parent=1 // pred_check_branch
      %16 = sbr.rel (0) target = $region5
    $region4: #{tpu_custom_call.1} parent=1 // pred_region
      %18 = vsyncadd [#allocation3], 0
      %s19 = sshll.u32 %s0, 4
      %s20 = int_to_ptr.hbm [resolvable:$true] %s19
      %s21 = sshll.u32 [#allocation2], 4
      %s22 = int_to_ptr.vmem [resolvable:$true] %s21
      %27 = dma.hbm_to_vmem [thread:$0]  %s20, 256, %s22, [#allocation3], 32, 32, 2
    $region5: #{tpu_custom_call.1} parent=1 // pred_fallthru
      _
    // Predicated region
    $region6: #{tpu_custom_call.1} parent=1 // pred_check
      _
    $region7: #{tpu_custom_call.1} parent=1 // pred_check_branch
      %29 = sbr.rel (0) target = $region9
    $region8: #{tpu_custom_call.1} parent=1 // pred_region
      %31 = vsyncadd [#allocation6], 0
      %s32 = sshll.u32 %s1, 4
      %s33 = int_to_ptr.hbm [resolvable:$true] %s32
      %s34 = sshll.u32 [#allocation5], 4
      %s35 = int_to_ptr.vmem [resolvable:$true] %s34
      %40 = dma.hbm_to_vmem [thread:$0]  %s33, 256, %s35, [#allocation6], 128, 128, 8
    $region9: #{tpu_custom_call.1} parent=1 // pred_fallthru
      _
    // Predicated region
    $region10: #{tpu_custom_call.1} parent=1 // pred_check
      _
    $region11: #{tpu_custom_call.1} parent=1 // pred_check_branch
      %42 = sbr.rel (0) target = $region13
    $region12: #{tpu_custom_call.1} parent=1 // pred_region
      %44 = vsyncadd [#allocation6], 0
      %s45 = sshll.u32 %s2, 4
      %s46 = int_to_ptr.hbm [resolvable:$true] %s45
      %s47 = sshll.u32 [#allocation7], 4
      %s48 = int_to_ptr.vmem [resolvable:$true] %s47
      %53 = dma.hbm_to_vmem [thread:$0]  %s46, 512, %s48, [#allocation6], 128, 128, 8
    $region13: #{tpu_custom_call.1} parent=1 // pred_fallthru
      _
    // Predicated region
    $region14: #{tpu_custom_call.1} parent=1 // pred_check
      _
    $region15: #{tpu_custom_call.1} parent=1 // pred_check_branch
      %55 = sbr.rel (0) target = $region17
    $region16: #{tpu_custom_call.1} parent=1 // pred_region
      _
    $region17: #{tpu_custom_call.1} parent=1 // pred_fallthru
      _
    // Predicated region
    $region18: #{tpu_custom_call.1} parent=1 // pred_check
      _
    $region19: #{tpu_custom_call.1} parent=1 // pred_check_branch
      %57 = sbr.rel (0) target = $region21
    $region20: #{tpu_custom_call.1} parent=1 // pred_region
      %59 = dma.done [#allocation3], 256
    $region21: #{tpu_custom_call.1} parent=1 // pred_fallthru
      _
    // Predicated region
    $region22: #{tpu_custom_call.1} parent=1 // pred_check
      _
    $region23: #{tpu_custom_call.1} parent=1 // pred_check_branch
      %61 = sbr.rel (0) target = $region25
    $region24: #{tpu_custom_call.1} parent=1 // pred_region
      %63 = dma.done [#allocation6], 256
    $region25: #{tpu_custom_call.1} parent=1 // pred_fallthru
      _
    // Predicated region
    $region26: #{tpu_custom_call.1} parent=1 // pred_check
      _
    $region27: #{tpu_custom_call.1} parent=1 // pred_check_branch
      %65 = sbr.rel (0) target = $region29
    $region28: #{tpu_custom_call.1} parent=1 // pred_region
      %67 = dma.done [#allocation6], 512
    $region29: #{tpu_custom_call.1} parent=1 // pred_fallthru
      _
    %v68 = vld [vmem:[#allocation2] sm:$0x3]
    %v69 = vld [vmem:[#allocation2 + $0x2] sm:$0x3]
    %v70 = vld [vmem:[#allocation2 + $0x4] sm:$0x3]
    %v71 = vld [vmem:[#allocation2 + $0x6] sm:$0x3]
    %v72 = vld [vmem:[#allocation2 + $0x8] sm:$0x3]
    %v73 = vld [vmem:[#allocation2 + $0xa] sm:$0x3]
    %v74 = vld [vmem:[#allocation2 + $0xc] sm:$0x3]
    %v75 = vld [vmem:[#allocation2 + $0xe] sm:$0x3]
    %v76 = vld [vmem:[#allocation5] sm:$0xff]
    %v77 = vld [vmem:[#allocation5 + $0x8] sm:$0xff]
    %v78 = vld [vmem:[%s3] sm:$0x1]
    %v80 = vperm.slane %v78, 0
    %89 = vst [vmem:[#allocation1] ss:$4 sm:$0xff] %v68
    %s90 = scalar_lea.vmem [#allocation1], 1
    %91 = vst [vmem:[%s90] ss:$4 sm:$0xff] %v69
    %s92 = scalar_lea.vmem [#allocation1], 2
    %93 = vst [vmem:[%s92] ss:$4 sm:$0xff] %v70
    %s94 = scalar_lea.vmem [#allocation1], 3
    %95 = vst [vmem:[%s94] ss:$4 sm:$0xff] %v71
    %s96 = scalar_lea.vmem [#allocation1], 32
    %97 = vst [vmem:[%s96] ss:$4 sm:$0xff] %v72
    %s98 = scalar_lea.vmem [#allocation1], 33
    %99 = vst [vmem:[%s98] ss:$4 sm:$0xff] %v73
    %s100 = scalar_lea.vmem [#allocation1], 34
    %101 = vst [vmem:[%s100] ss:$4 sm:$0xff] %v74
    %s102 = scalar_lea.vmem [#allocation1], 35
    %103 = vst [vmem:[%s102] ss:$4 sm:$0xff] %v75
    %v104 = vld.sshfl [vmem:[#allocation1] sm:$0xff pattern:$0x73625140]
    %v105 = vld.sshfl [vmem:[#allocation1 + $0x20] sm:$0xff pattern:$0x73625140]
    %106 = vst [vmem:[#allocation1] ss:$4 sm:$0xff] %v80
    %s107 = scalar_lea.vmem [#allocation1], 1
    %108 = vst [vmem:[%s107] ss:$4 sm:$0xff] %v80
    %s109 = scalar_lea.vmem [#allocation1], 2
    %110 = vst [vmem:[%s109] ss:$4 sm:$0xff] %v80
    %s111 = scalar_lea.vmem [#allocation1], 3
    %112 = vst [vmem:[%s111] ss:$4 sm:$0xff] %v80
    %s113 = scalar_lea.vmem [#allocation1], 32
    %114 = vst [vmem:[%s113] ss:$4 sm:$0xff] %v80
    %s115 = scalar_lea.vmem [#allocation1], 33
    %116 = vst [vmem:[%s115] ss:$4 sm:$0xff] %v80
    %s117 = scalar_lea.vmem [#allocation1], 34
    %118 = vst [vmem:[%s117] ss:$4 sm:$0xff] %v80
    %s119 = scalar_lea.vmem [#allocation1], 35
    %120 = vst [vmem:[%s119] ss:$4 sm:$0xff] %v80
    %v121 = vld.sshfl [vmem:[#allocation1] sm:$0xff pattern:$0x73625140]
    %v122 = vld.sshfl [vmem:[#allocation1 + $0x20] sm:$0xff pattern:$0x73625140]
    %vm125 = vcmask 130048
    %v126 = vsel %vm125, %v104, 0
    %v128 = vsel %vm125, %v105, 0
    %130 = vmatpush.msra.mxu0 0.0
    %131 = vmatpush.msra.mxu0 0.0
    %132 = vmatpush.msra.mxu0 0.0
    %133 = vmatpush.msra.mxu0 0.0
    %134 = vmatpush.msra.mxu0 0.0
    %135 = vmatpush.msra.mxu0 0.0
    %136 = vmatpush.msra.mxu0 0.0
    %137 = vmatpush.msra.mxu0 0.0
    %138 = vmatpush.msra.mxu0 0.0
    %139 = vmatpush.msra.mxu0 0.0
    %140 = vmatpush.msra.mxu0 0.0
    %141 = vmatpush.msra.mxu0 0.0
    %142 = vmatpush.msra.mxu0 0.0
    %143 = vmatpush.msra.mxu0 0.0
    %144 = vmatpush.msra.mxu0 %v77
    %145 = vmatpush.msra.mxu0 %v76
    %146 = vmatmul.f32.gmra.mxu0 %v126
    %v147 = vpop.f32.mrf.mxu0
    %v148 = vadd.f32 %v121, %v147
    %149 = vmatmul.f32.gmra.mxu0 %v128
    %v150 = vpop.f32.mrf.mxu0
    %v151 = vadd.f32 %v122, %v150
    %152 = vdwg.mxu0
    %v155 = vrot.slane %v148, 2
    %v156 = vrot.slane %v148, 4
    %v157 = vrot.slane %v148, 6
    %v158 = vrot.slane %v151, 2
    %v159 = vrot.slane %v151, 4
    %v160 = vrot.slane %v151, 6
    %v167 = vld [vmem:[#allocation7] sm:$0xff]
    %v168 = vld [vmem:[#allocation7 + $0x8] sm:$0xff]
    %v169 = vld [vmem:[#allocation7 + $0x10] sm:$0xff]
    %v170 = vld [vmem:[#allocation7 + $0x18] sm:$0xff]
    %vm171 = vcmask 261120
    %v173 = vsel %vm171, 0.0, 0
    %175 = vmatpush.msra.mxu0 0.0
    %176 = vmatpush.msra.mxu0 0.0
    %177 = vmatpush.msra.mxu0 0.0
    %178 = vmatpush.msra.mxu0 0.0
    %179 = vmatpush.msra.mxu0 0.0
    %180 = vmatpush.msra.mxu0 0.0
    %181 = vmatpush.msra.mxu0 0.0
    %182 = vmatpush.msra.mxu0 0.0
    %183 = vmatpush.msra.mxu0 0.0
    %184 = vmatpush.msra.mxu0 0.0
    %185 = vmatpush.msra.mxu0 0.0
    %186 = vmatpush.msra.mxu0 0.0
    %187 = vmatpush.msra.mxu0 %v170
    %188 = vmatpush.msra.mxu0 %v169
    %189 = vmatpush.msra.mxu0 %v168
    %190 = vmatpush.msra.mxu0 %v167
    %191 = vmatmul.f32.gmra.mxu0 %v173
    %v192 = vpop.f32.mrf.mxu0
    %v193 = vadd.f32 0.0, %v192
    %194 = vdwg.mxu0
    %v195 = vadd.f32 %v148, %v193
    %v196 = vxor.u32 %v195, 2147483648
    %v197 = vmul.f32 %v196, 1.442695
    %v198 = vpow.pop %v197
    %v199 = vadd.f32 %v198, 1.0
    %v200 = vrcp.pop %v199
    %v201 = vmul.f32 %v199, %v200
    %v202 = vsub.f32 1.0, %v201
    %v203 = vmul.f32 %v200, %v202
    %v204 = vadd.f32 %v200, %v203
    %vm205 = vweird.f32 %v199
    %vm206 = vweird.f32 %v200
    %vm207 = vmor %vm205, %vm206
    %v208 = vsel %vm207, %v200, %v204
    %v209 = vand.u32 2147483647, %v199
    %vm210 = vcmp.eq.f32.partialorder %v209, 8.507059e+37
    %v211 = vand.u32 %v199, 2147483648
    %v212 = vor.u32 1.1754944e-38, %v211
    %v213 = vsel %vm210, %v212, %v208
    %v214 = vmul.f32 1.0, %v213
    %v215 = vtanh.pop %v195
    %v216 = vmul.f32 %v214, 0.0
    %218 = vrot.lane.b32.xlu0 %v215, 32
    %v219 = vpop.permute.xlu0 %218
    %v221 = vmul.f32 %v214, %v219
    %223 = vrot.lane.b32.xlu0 %v221, 32
    %v224 = vpop.permute.xlu0 %223
    %v226 = vadd.f32 %v216, %v224
    %v227 = vtanh.pop %v226
    %229 = vrot.lane.b32.xlu0 %v227, 32
    %v230 = vpop.permute.xlu0 %229
    %v232 = vmul.f32 %v214, %v230
    %234 = vst [vmem:[#allocation1] ss:$4 sm:$0xff] %v232
    %v235 = vld.sshfl [vmem:[#allocation1] sm:$0xff pattern:$0x73625140]
    %236 = vrot.lane.b32.xlu0 %v235, 64
    %v237 = vpop.permute.xlu0 %236
    %v238 = vsel %vm171, %v237, 0
    %240 = vmatpush.msra.mxu0 0.0
    %241 = vmatpush.msra.mxu0 0.0
    %242 = vmatpush.msra.mxu0 0.0
    %243 = vmatpush.msra.mxu0 0.0
    %244 = vmatpush.msra.mxu0 0.0
    %245 = vmatpush.msra.mxu0 0.0
    %246 = vmatpush.msra.mxu0 0.0
    %247 = vmatpush.msra.mxu0 0.0
    %248 = vmatpush.msra.mxu0 0.0
    %249 = vmatpush.msra.mxu0 0.0
    %250 = vmatpush.msra.mxu0 0.0
    %251 = vmatpush.msra.mxu0 0.0
    %252 = vmatpush.msra.mxu0 %v170
    %253 = vmatpush.msra.mxu0 %v169
    %254 = vmatpush.msra.mxu0 %v168
    %255 = vmatpush.msra.mxu0 %v167
    %256 = vmatmul.f32.gmra.mxu0 %v238
    %v257 = vpop.f32.mrf.mxu0
    %v258 = vadd.f32 0.0, %v257
    %259 = vdwg.mxu0
    %v260 = vadd.f32 %v155, %v258
    %v261 = vxor.u32 %v260, 2147483648
    %v262 = vmul.f32 %v261, 1.442695
    %v263 = vpow.pop %v262
    %v264 = vadd.f32 %v263, 1.0
    %v265 = vrcp.pop %v264
    %v266 = vmul.f32 %v264, %v265
    %v267 = vsub.f32 1.0, %v266
    %v268 = vmul.f32 %v265, %v267
    %v269 = vadd.f32 %v265, %v268
    %vm270 = vweird.f32 %v264
    %vm271 = vweird.f32 %v265
    %vm272 = vmor %vm270, %vm271
    %v273 = vsel %vm272, %v265, %v269
    %v274 = vand.u32 2147483647, %v264
    %vm275 = vcmp.eq.f32.partialorder %v274, 8.507059e+37
    %v276 = vand.u32 %v264, 2147483648
    %v277 = vor.u32 1.1754944e-38, %v276
    %v278 = vsel %vm275, %v277, %v273
    %v279 = vmul.f32 1.0, %v278
    %v280 = vtanh.pop %v260
    %v281 = vmul.f32 %v279, %v226
    %283 = vrot.lane.b32.xlu0 %v280, 32
    %v284 = vpop.permute.xlu0 %283
    %v286 = vmul.f32 %v279, %v284
    %288 = vrot.lane.b32.xlu0 %v286, 32
    %v289 = vpop.permute.xlu0 %288
    %v291 = vadd.f32 %v281, %v289
    %v292 = vtanh.pop %v291
    %294 = vrot.lane.b32.xlu0 %v292, 32
    %v295 = vpop.permute.xlu0 %294
    %v297 = vmul.f32 %v279, %v295
    %299 = vst [vmem:[#allocation1] ss:$4 sm:$0xff] %v297
    %v300 = vld.sshfl [vmem:[#allocation1] sm:$0xff pattern:$0x73625140]
    %301 = vrot.lane.b32.xlu0 %v300, 64
    %v302 = vpop.permute.xlu0 %301
    %v303 = vsel %vm171, %v302, 0
    %305 = vmatpush.msra.mxu0 0.0
    %306 = vmatpush.msra.mxu0 0.0
    %307 = vmatpush.msra.mxu0 0.0
    %308 = vmatpush.msra.mxu0 0.0
    %309 = vmatpush.msra.mxu0 0.0
    %310 = vmatpush.msra.mxu0 0.0
    %311 = vmatpush.msra.mxu0 0.0
    %312 = vmatpush.msra.mxu0 0.0
    %313 = vmatpush.msra.mxu0 0.0
    %314 = vmatpush.msra.mxu0 0.0
    %315 = vmatpush.msra.mxu0 0.0
    %316 = vmatpush.msra.mxu0 0.0
    %317 = vmatpush.msra.mxu0 %v170
    %318 = vmatpush.msra.mxu0 %v169
    %319 = vmatpush.msra.mxu0 %v168
    %320 = vmatpush.msra.mxu0 %v167
    %321 = vmatmul.f32.gmra.mxu0 %v303
    %v322 = vpop.f32.mrf.mxu0
    %v323 = vadd.f32 0.0, %v322
    %324 = vdwg.mxu0
    %v325 = vadd.f32 %v156, %v323
    %v326 = vxor.u32 %v325, 2147483648
    %v327 = vmul.f32 %v326, 1.442695
    %v328 = vpow.pop %v327
    %v329 = vadd.f32 %v328, 1.0
    %v330 = vrcp.pop %v329
    %v331 = vmul.f32 %v329, %v330
    %v332 = vsub.f32 1.0, %v331
    %v333 = vmul.f32 %v330, %v332
    %v334 = vadd.f32 %v330, %v333
    %vm335 = vweird.f32 %v329
    %vm336 = vweird.f32 %v330
    %vm337 = vmor %vm335, %vm336
    %v338 = vsel %vm337, %v330, %v334
    %v339 = vand.u32 2147483647, %v329
    %vm340 = vcmp.eq.f32.partialorder %v339, 8.507059e+37
    %v341 = vand.u32 %v329, 2147483648
    %v342 = vor.u32 1.1754944e-38, %v341
    %v343 = vsel %vm340, %v342, %v338
    %v344 = vmul.f32 1.0, %v343
    %v345 = vtanh.pop %v325
    %v346 = vmul.f32 %v344, %v291
    %348 = vrot.lane.b32.xlu0 %v345, 32
    %v349 = vpop.permute.xlu0 %348
    %v351 = vmul.f32 %v344, %v349
    %353 = vrot.lane.b32.xlu0 %v351, 32
    %v354 = vpop.permute.xlu0 %353
    %v356 = vadd.f32 %v346, %v354
    %v357 = vtanh.pop %v356
    %359 = vrot.lane.b32.xlu0 %v357, 32
    %v360 = vpop.permute.xlu0 %359
    %v362 = vmul.f32 %v344, %v360
    %364 = vst [vmem:[#allocation1] ss:$4 sm:$0xff] %v362
    %v365 = vld.sshfl [vmem:[#allocation1] sm:$0xff pattern:$0x73625140]
    %366 = vrot.lane.b32.xlu0 %v365, 64
    %v367 = vpop.permute.xlu0 %366
    %v368 = vsel %vm171, %v367, 0
    %370 = vmatpush.msra.mxu0 0.0
    %371 = vmatpush.msra.mxu0 0.0
    %372 = vmatpush.msra.mxu0 0.0
    %373 = vmatpush.msra.mxu0 0.0
    %374 = vmatpush.msra.mxu0 0.0
    %375 = vmatpush.msra.mxu0 0.0
    %376 = vmatpush.msra.mxu0 0.0
    %377 = vmatpush.msra.mxu0 0.0
    %378 = vmatpush.msra.mxu0 0.0
    %379 = vmatpush.msra.mxu0 0.0
    %380 = vmatpush.msra.mxu0 0.0
    %381 = vmatpush.msra.mxu0 0.0
    %382 = vmatpush.msra.mxu0 %v170
    %383 = vmatpush.msra.mxu0 %v169
    %384 = vmatpush.msra.mxu0 %v168
    %385 = vmatpush.msra.mxu0 %v167
    %386 = vmatmul.f32.gmra.mxu0 %v368
    %v387 = vpop.f32.mrf.mxu0
    %v388 = vadd.f32 0.0, %v387
    %389 = vdwg.mxu0
    %v390 = vadd.f32 %v157, %v388
    %v391 = vxor.u32 %v390, 2147483648
    %v392 = vmul.f32 %v391, 1.442695
    %v393 = vpow.pop %v392
    %v394 = vadd.f32 %v393, 1.0
    %v395 = vrcp.pop %v394
    %v396 = vmul.f32 %v394, %v395
    %v397 = vsub.f32 1.0, %v396
    %v398 = vmul.f32 %v395, %v397
    %v399 = vadd.f32 %v395, %v398
    %vm400 = vweird.f32 %v394
    %vm401 = vweird.f32 %v395
    %vm402 = vmor %vm400, %vm401
    %v403 = vsel %vm402, %v395, %v399
    %v404 = vand.u32 2147483647, %v394
    %vm405 = vcmp.eq.f32.partialorder %v404, 8.507059e+37
    %v406 = vand.u32 %v394, 2147483648
    %v407 = vor.u32 1.1754944e-38, %v406
    %v408 = vsel %vm405, %v407, %v403
    %v409 = vmul.f32 1.0, %v408
    %v410 = vtanh.pop %v390
    %v411 = vmul.f32 %v409, %v356
    %413 = vrot.lane.b32.xlu0 %v410, 32
    %v414 = vpop.permute.xlu0 %413
    %v416 = vmul.f32 %v409, %v414
    %418 = vrot.lane.b32.xlu0 %v416, 32
    %v419 = vpop.permute.xlu0 %418
    %v421 = vadd.f32 %v411, %v419
    %v422 = vtanh.pop %v421
    %424 = vrot.lane.b32.xlu0 %v422, 32
    %v425 = vpop.permute.xlu0 %424
    %v427 = vmul.f32 %v409, %v425
    %429 = vst [vmem:[#allocation1] ss:$4 sm:$0xff] %v427
    %v430 = vld.sshfl [vmem:[#allocation1] sm:$0xff pattern:$0x73625140]
    %431 = vrot.lane.b32.xlu0 %v430, 64
    %v432 = vpop.permute.xlu0 %431
    %v433 = vsel %vm171, %v432, 0
    %435 = vmatpush.msra.mxu0 0.0
    %436 = vmatpush.msra.mxu0 0.0
    %437 = vmatpush.msra.mxu0 0.0
    %438 = vmatpush.msra.mxu0 0.0
    %439 = vmatpush.msra.mxu0 0.0
    %440 = vmatpush.msra.mxu0 0.0
    %441 = vmatpush.msra.mxu0 0.0
    %442 = vmatpush.msra.mxu0 0.0
    %443 = vmatpush.msra.mxu0 0.0
    %444 = vmatpush.msra.mxu0 0.0
    %445 = vmatpush.msra.mxu0 0.0
    %446 = vmatpush.msra.mxu0 0.0
    %447 = vmatpush.msra.mxu0 %v170
    %448 = vmatpush.msra.mxu0 %v169
    %449 = vmatpush.msra.mxu0 %v168
    %450 = vmatpush.msra.mxu0 %v167
    %451 = vmatmul.f32.gmra.mxu0 %v433
    %v452 = vpop.f32.mrf.mxu0
    %v453 = vadd.f32 0.0, %v452
    %454 = vdwg.mxu0
    %v455 = vadd.f32 %v151, %v453
    %v456 = vxor.u32 %v455, 2147483648
    %v457 = vmul.f32 %v456, 1.442695
    %v458 = vpow.pop %v457
    %v459 = vadd.f32 %v458, 1.0
    %v460 = vrcp.pop %v459
    %v461 = vmul.f32 %v459, %v460
    %v462 = vsub.f32 1.0, %v461
    %v463 = vmul.f32 %v460, %v462
    %v464 = vadd.f32 %v460, %v463
    %vm465 = vweird.f32 %v459
    %vm466 = vweird.f32 %v460
    %vm467 = vmor %vm465, %vm466
    %v468 = vsel %vm467, %v460, %v464
    %v469 = vand.u32 2147483647, %v459
    %vm470 = vcmp.eq.f32.partialorder %v469, 8.507059e+37
    %v471 = vand.u32 %v459, 2147483648
    %v472 = vor.u32 1.1754944e-38, %v471
    %v473 = vsel %vm470, %v472, %v468
    %v474 = vmul.f32 1.0, %v473
    %v475 = vtanh.pop %v455
    %v476 = vmul.f32 %v474, %v421
    %478 = vrot.lane.b32.xlu0 %v475, 32
    %v479 = vpop.permute.xlu0 %478
    %v481 = vmul.f32 %v474, %v479
    %483 = vrot.lane.b32.xlu0 %v481, 32
    %v484 = vpop.permute.xlu0 %483
    %v486 = vadd.f32 %v476, %v484
    %v487 = vtanh.pop %v486
    %489 = vrot.lane.b32.xlu0 %v487, 32
    %v490 = vpop.permute.xlu0 %489
    %v492 = vmul.f32 %v474, %v490
    %494 = vst [vmem:[#allocation1] ss:$4 sm:$0xff] %v492
    %v495 = vld.sshfl [vmem:[#allocation1] sm:$0xff pattern:$0x73625140]
    %496 = vrot.lane.b32.xlu0 %v495, 64
    %v497 = vpop.permute.xlu0 %496
    %v498 = vsel %vm171, %v497, 0
    %500 = vmatpush.msra.mxu0 0.0
    %501 = vmatpush.msra.mxu0 0.0
    %502 = vmatpush.msra.mxu0 0.0
    %503 = vmatpush.msra.mxu0 0.0
    %504 = vmatpush.msra.mxu0 0.0
    %505 = vmatpush.msra.mxu0 0.0
    %506 = vmatpush.msra.mxu0 0.0
    %507 = vmatpush.msra.mxu0 0.0
    %508 = vmatpush.msra.mxu0 0.0
    %509 = vmatpush.msra.mxu0 0.0
    %510 = vmatpush.msra.mxu0 0.0
    %511 = vmatpush.msra.mxu0 0.0
    %512 = vmatpush.msra.mxu0 %v170
    %513 = vmatpush.msra.mxu0 %v169
    %514 = vmatpush.msra.mxu0 %v168
    %515 = vmatpush.msra.mxu0 %v167
    %516 = vmatmul.f32.gmra.mxu0 %v498
    %v517 = vpop.f32.mrf.mxu0
    %v518 = vadd.f32 0.0, %v517
    %519 = vdwg.mxu0
    %v520 = vadd.f32 %v158, %v518
    %v521 = vxor.u32 %v520, 2147483648
    %v522 = vmul.f32 %v521, 1.442695
    %v523 = vpow.pop %v522
    %v524 = vadd.f32 %v523, 1.0
    %v525 = vrcp.pop %v524
    %v526 = vmul.f32 %v524, %v525
    %v527 = vsub.f32 1.0, %v526
    %v528 = vmul.f32 %v525, %v527
    %v529 = vadd.f32 %v525, %v528
    %vm530 = vweird.f32 %v524
    %vm531 = vweird.f32 %v525
    %vm532 = vmor %vm530, %vm531
    %v533 = vsel %vm532, %v525, %v529
    %v534 = vand.u32 2147483647, %v524
    %vm535 = vcmp.eq.f32.partialorder %v534, 8.507059e+37
    %v536 = vand.u32 %v524, 2147483648
    %v537 = vor.u32 1.1754944e-38, %v536
    %v538 = vsel %vm535, %v537, %v533
    %v539 = vmul.f32 1.0, %v538
    %v540 = vtanh.pop %v520
    %v541 = vmul.f32 %v539, %v486
    %543 = vrot.lane.b32.xlu0 %v540, 32
    %v544 = vpop.permute.xlu0 %543
    %v546 = vmul.f32 %v539, %v544
    %548 = vrot.lane.b32.xlu0 %v546, 32
    %v549 = vpop.permute.xlu0 %548
    %v551 = vadd.f32 %v541, %v549
    %v552 = vtanh.pop %v551
    %554 = vrot.lane.b32.xlu0 %v552, 32
    %v555 = vpop.permute.xlu0 %554
    %v557 = vmul.f32 %v539, %v555
    %559 = vst [vmem:[#allocation1] ss:$4 sm:$0xff] %v557
    %v560 = vld.sshfl [vmem:[#allocation1] sm:$0xff pattern:$0x73625140]
    %561 = vrot.lane.b32.xlu0 %v560, 64
    %v562 = vpop.permute.xlu0 %561
    %v563 = vsel %vm171, %v562, 0
    %565 = vmatpush.msra.mxu0 0.0
    %566 = vmatpush.msra.mxu0 0.0
    %567 = vmatpush.msra.mxu0 0.0
    %568 = vmatpush.msra.mxu0 0.0
    %569 = vmatpush.msra.mxu0 0.0
    %570 = vmatpush.msra.mxu0 0.0
    %571 = vmatpush.msra.mxu0 0.0
    %572 = vmatpush.msra.mxu0 0.0
    %573 = vmatpush.msra.mxu0 0.0
    %574 = vmatpush.msra.mxu0 0.0
    %575 = vmatpush.msra.mxu0 0.0
    %576 = vmatpush.msra.mxu0 0.0
    %577 = vmatpush.msra.mxu0 %v170
    %578 = vmatpush.msra.mxu0 %v169
    %579 = vmatpush.msra.mxu0 %v168
    %580 = vmatpush.msra.mxu0 %v167
    %581 = vmatmul.f32.gmra.mxu0 %v563
    %v582 = vpop.f32.mrf.mxu0
    %v583 = vadd.f32 0.0, %v582
    %584 = vdwg.mxu0
    %v585 = vadd.f32 %v159, %v583
    %v586 = vxor.u32 %v585, 2147483648
    %v587 = vmul.f32 %v586, 1.442695
    %v588 = vpow.pop %v587
    %v589 = vadd.f32 %v588, 1.0
    %v590 = vrcp.pop %v589
    %v591 = vmul.f32 %v589, %v590
    %v592 = vsub.f32 1.0, %v591
    %v593 = vmul.f32 %v590, %v592
    %v594 = vadd.f32 %v590, %v593
    %vm595 = vweird.f32 %v589
    %vm596 = vweird.f32 %v590
    %vm597 = vmor %vm595, %vm596
    %v598 = vsel %vm597, %v590, %v594
    %v599 = vand.u32 2147483647, %v589
    %vm600 = vcmp.eq.f32.partialorder %v599, 8.507059e+37
    %v601 = vand.u32 %v589, 2147483648
    %v602 = vor.u32 1.1754944e-38, %v601
    %v603 = vsel %vm600, %v602, %v598
    %v604 = vmul.f32 1.0, %v603
    %v605 = vtanh.pop %v585
    %v606 = vmul.f32 %v604, %v551
    %608 = vrot.lane.b32.xlu0 %v605, 32
    %v609 = vpop.permute.xlu0 %608
    %v611 = vmul.f32 %v604, %v609
    %613 = vrot.lane.b32.xlu0 %v611, 32
    %v614 = vpop.permute.xlu0 %613
    %v616 = vadd.f32 %v606, %v614
    %v617 = vtanh.pop %v616
    %619 = vrot.lane.b32.xlu0 %v617, 32
    %v620 = vpop.permute.xlu0 %619
    %v622 = vmul.f32 %v604, %v620
    %624 = vst [vmem:[#allocation1] ss:$4 sm:$0xff] %v622
    %v625 = vld.sshfl [vmem:[#allocation1] sm:$0xff pattern:$0x73625140]
    %626 = vrot.lane.b32.xlu0 %v625, 64
    %v627 = vpop.permute.xlu0 %626
    %v628 = vsel %vm171, %v627, 0
    %630 = vmatpush.msra.mxu0 0.0
    %631 = vmatpush.msra.mxu0 0.0
    %632 = vmatpush.msra.mxu0 0.0
    %633 = vmatpush.msra.mxu0 0.0
    %634 = vmatpush.msra.mxu0 0.0
    %635 = vmatpush.msra.mxu0 0.0
    %636 = vmatpush.msra.mxu0 0.0
    %637 = vmatpush.msra.mxu0 0.0
    %638 = vmatpush.msra.mxu0 0.0
    %639 = vmatpush.msra.mxu0 0.0
    %640 = vmatpush.msra.mxu0 0.0
    %641 = vmatpush.msra.mxu0 0.0
    %642 = vmatpush.msra.mxu0 %v170
    %643 = vmatpush.msra.mxu0 %v169
    %644 = vmatpush.msra.mxu0 %v168
    %645 = vmatpush.msra.mxu0 %v167
    %646 = vmatmul.f32.gmra.mxu0 %v628
    %v647 = vpop.f32.mrf.mxu0
    %v648 = vadd.f32 0.0, %v647
    %649 = vdwg.mxu0
    %v650 = vadd.f32 %v160, %v648
    %v651 = vxor.u32 %v650, 2147483648
    %v652 = vmul.f32 %v651, 1.442695
    %v653 = vpow.pop %v652
    %v654 = vadd.f32 %v653, 1.0
    %v655 = vrcp.pop %v654
    %v656 = vmul.f32 %v654, %v655
    %v657 = vsub.f32 1.0, %v656
    %v658 = vmul.f32 %v655, %v657
    %v659 = vadd.f32 %v655, %v658
    %vm660 = vweird.f32 %v654
    %vm661 = vweird.f32 %v655
    %vm662 = vmor %vm660, %vm661
    %v663 = vsel %vm662, %v655, %v659
    %v664 = vand.u32 2147483647, %v654
    %vm665 = vcmp.eq.f32.partialorder %v664, 8.507059e+37
    %v666 = vand.u32 %v654, 2147483648
    %v667 = vor.u32 1.1754944e-38, %v666
    %v668 = vsel %vm665, %v667, %v663
    %v669 = vmul.f32 1.0, %v668
    %v670 = vtanh.pop %v650
    %v671 = vmul.f32 %v669, %v616
    %673 = vrot.lane.b32.xlu0 %v670, 32
    %v674 = vpop.permute.xlu0 %673
    %v676 = vmul.f32 %v669, %v674
    %678 = vrot.lane.b32.xlu0 %v676, 32
    %v679 = vpop.permute.xlu0 %678
    %v681 = vadd.f32 %v671, %v679
    %v682 = vtanh.pop %v681
    %684 = vrot.lane.b32.xlu0 %v682, 32
    %v685 = vpop.permute.xlu0 %684
    %v687 = vmul.f32 %v669, %v685
    %689 = vst [vmem:[#allocation1] ss:$4 sm:$0xff] %v687
    %v690 = vld.sshfl [vmem:[#allocation1] sm:$0xff pattern:$0x73625140]
    %691 = vrot.lane.b32.xlu0 %v690, 64
    %v692 = vpop.permute.xlu0 %691
    %vm694 = vcmask 254976
    %695 = vst.msk [vmem:[#allocation8] sm:$0x3] %vm694, %v692
    %697 = vst [vmem:[#allocation1] ss:$4 sm:$0xff] %v681
    %v698 = vld.sshfl [vmem:[#allocation1] sm:$0xff pattern:$0x73625140]
    %699 = vrot.lane.b32.xlu0 %v698, 96
    %v700 = vpop.permute.xlu0 %699
    %702 = vst.msk [vmem:[#allocation9] sm:$0x3] %vm694, %v700
    // Predicated region
    $region30: #{tpu_custom_call.1} parent=1 // pred_check
      _
    $region31: #{tpu_custom_call.1} parent=1 // pred_check_branch
      %704 = sbr.rel (0) target = $region33
    $region32: #{tpu_custom_call.1} parent=1 // pred_region
      %706 = vsyncadd [#allocation4], 0
      %s708 = sshll.u32 [#allocation8], 4
      %s709 = int_to_ptr.vmem [resolvable:$true] %s708
      %s710 = sshll.u32 %s4, 4
      %s711 = int_to_ptr.hbm [resolvable:$true] %s710
      %713 = dma.vmem_to_hbm [thread:$0]  %s709, 32, %s711, [#allocation4]
    $region33: #{tpu_custom_call.1} parent=1 // pred_fallthru
      _
    // Predicated region
    $region34: #{tpu_custom_call.1} parent=1 // pred_check
      _
    $region35: #{tpu_custom_call.1} parent=1 // pred_check_branch
      %715 = sbr.rel (0) target = $region37
    $region36: #{tpu_custom_call.1} parent=1 // pred_region
      %717 = vsyncadd [#allocation10], 0
      %s719 = sshll.u32 [#allocation9], 4
      %s720 = int_to_ptr.vmem [resolvable:$true] %s719
      %s721 = sshll.u32 %s5, 4
      %s722 = int_to_ptr.hbm [resolvable:$true] %s721
      %724 = dma.vmem_to_hbm [thread:$0]  %s720, 32, %s722, [#allocation10]
    $region37: #{tpu_custom_call.1} parent=1 // pred_fallthru
      _
    // Predicated region
    $region38: #{tpu_custom_call.1} parent=1 // pred_check
      _
    $region39: #{tpu_custom_call.1} parent=1 // pred_check_branch
      %726 = sbr.rel (0) target = $region41
    $region40: #{tpu_custom_call.1} parent=1 // pred_region
      %728 = dma.done [#allocation4], 32
    $region41: #{tpu_custom_call.1} parent=1 // pred_fallthru
      _
    // Predicated region
    $region42: #{tpu_custom_call.1} parent=1 // pred_check
      _
    $region43: #{tpu_custom_call.1} parent=1 // pred_check_branch
      %730 = sbr.rel (0) target = $region45
    $region44: #{tpu_custom_call.1} parent=1 // pred_region
      %732 = dma.done [#allocation10], 32
    $region45: #{tpu_custom_call.1} parent=1 // pred_fallthru
      _
    %733 = vsyncpa [#allocation3], 1
    %734 = vsyncpa [#allocation6], 1
    %735 = vsyncpa [#allocation4], 1
    %736 = vsyncpa [#allocation10], 1

</llo_original>
